<compile_context>
chip_gen: v7x
topology: tpu7x:2x2x1
jax: 0.10.0
libtpu: 0.0.40
codegen_flags: <defaults>
</compile_context>

<pallas_src>
import jax
import jax.numpy as jnp
from jax import lax
from jax.experimental import pallas as pl
from jax.experimental.pallas import tpu as pltpu


# ----------------------------- Pallas kernels --------------------------------
def _gather_unmasked(x, idx, out_ref):
    """Gather the unmasked patch rows via a batched one-hot matmul (MXU).

    x:   (Bt, N, D)   patch embeddings, native dtype (not upcast)
    idx: (Bt, Nu, 1)  int32 indices of unmasked patches
    """
    N = x.shape[1]
    col = lax.broadcasted_iota(jnp.int32, (1, 1, N), 2)            # (1, 1, N)
    # 0/1 one-hot is exact in any float dtype; build it in x's dtype so bf16
    # inputs use the native bf16 MXU path and f32 inputs stay exact.
    onehot = (idx == col).astype(x.dtype)                          # (Bt, Nu, N)
    g = lax.dot_general(
        onehot, x,
        dimension_numbers=(((2,), (1,)), ((0,), (0,))),
        preferred_element_type=jnp.float32)                        # (Bt, Nu, D)
    out_ref[...] = g.astype(out_ref.dtype)
    # TODO(synk): for production-scale N (>=512 patches) replace the one-hot
    # matmul with a scalar-prefetch DMA row gather and tile N with an
    # "arbitrary" reduction axis + f32 accumulator to fit v7x's 64 MiB VMEM.


def _mask_kernel_wide(x_ref, emb_ref, m_ref, idx_ref,
                      out_masked_ref, out_unmasked_ref):
    # Path for D % 128 == 0: natural layout is already lane-dense.
    # x_ref: (Bt, N, D), emb_ref: (1, 1, D), m_ref: (Bt, N, 1) int32,
    # idx_ref: (Bt, Nu, 1) int32.
    x = x_ref[...]
    m = m_ref[...] != 0
    out_masked_ref[...] = jnp.where(m, emb_ref[...], x)
    _gather_unmasked(x, idx_ref[...], out_unmasked_ref)


def _mask_kernel_dense(x_ref, xd_ref, embd_ref, md_ref, idx_ref,
                       out_masked_ref, out_unmasked_ref):
    # Path for D < 128: the `where` operands/outputs are folded to
    # (Bt, N*D//128, 128) so all loads/stores are full-lane (unmasked) vld/vst.
    # x_ref:   (Bt, N, D)        row layout, feeds the gather
    # xd_ref:  (Bt, F, 128)      lane-dense x
    # embd_ref:(1,  F, 128)      mask embedding broadcast to (N, D) and folded
    # md_ref:  (Bt, F, 128) int8 bool mask broadcast to (N, D) and folded
    out_masked_ref[...] = jnp.where(md_ref[...] != 0, embd_ref[...], xd_ref[...])
    _gather_unmasked(x_ref[...], idx_ref[...], out_unmasked_ref)


# ------------------------------ Wrapper ---------------------------------------
def _choose_bt(B, per_batch_bytes, *, vmem_budget_bytes=4 << 20, min_grid_steps=2):
    """Largest divisor of B s.t. the per-step block set stays under the VMEM
    budget and (for v7x megacore) the grid keeps >= 2 parallel steps."""
    bt = 1
    for cand in range(1, B + 1):
        if B % cand:
            continue
        if B >= min_grid_steps and (B // cand) < min_grid_steps:
            break
        if cand * per_batch_bytes > vmem_budget_bytes:
            break
        bt = cand
    return bt


def _mask_pallas(patch_embeddings, encoder_mask_emb, bool_mask, unmasked_indices):
    B, N, D = patch_embeddings.shape
    Nu = unmasked_indices.shape[1]
    dtype = patch_embeddings.dtype
    itemsize = jnp.dtype(dtype).itemsize

    idx3 = unmasked_indices.astype(jnp.int32).reshape(B, Nu, 1)

    compiler_params = pltpu.CompilerParams(
        dimension_semantics=("parallel",),
        # 32 MiB scoped VMEM: raises v5e's 16 MiB default, matches v6e/v7x.
        vmem_limit_bytes=32 * 1024 * 1024,
    )

    lane_dense = (D % 128 != 0) and ((N * D) % 128 == 0)

    if lane_dense:
        F = (N * D) // 128
        x_dense = patch_embeddings.reshape(B, F, 128)
        mask_dense = (jnp.broadcast_to(bool_mask[:, :, None], (B, N, D))
                      .astype(jnp.int8).reshape(B, F, 128))
        emb_dense = jnp.broadcast_to(
            encoder_mask_emb.astype(dtype)[None, :], (N, D)).reshape(1, F, 128)

        # x is read twice (row layout for the gather, dense layout for the
        # where) — only taken when D < 128, i.e. small models.
        per_batch = (2 * N * D + Nu * D) * itemsize + N * D  # + int8 mask
        Bt = _choose_bt(B, per_batch)

        grid_spec = pl.GridSpec(
            grid=(B // Bt,),
            in_specs=[
                pl.BlockSpec((Bt, N, D), lambda b: (b, 0, 0)),    # x (row layout)
                pl.BlockSpec((Bt, F, 128), lambda b: (b, 0, 0)),  # x (lane-dense)
                pl.BlockSpec((1, F, 128), lambda b: (0, 0, 0)),   # mask embedding
                pl.BlockSpec((Bt, F, 128), lambda b: (b, 0, 0)),  # bool mask (int8)
                pl.BlockSpec((Bt, Nu, 1), lambda b: (b, 0, 0)),   # unmasked indices
            ],
            out_specs=[
                pl.BlockSpec((Bt, F, 128), lambda b: (b, 0, 0)),  # masked (dense)
                pl.BlockSpec((Bt, Nu, D), lambda b: (b, 0, 0)),   # gathered rows
            ],
        )
        out_masked_dense, out_unmasked = pl.pallas_call(
            _mask_kernel_dense,
            grid_spec=grid_spec,
            out_shape=(
                jax.ShapeDtypeStruct((B, F, 128), dtype),
                jax.ShapeDtypeStruct((B, Nu, D), dtype),
            ),
            compiler_params=compiler_params,
        )(patch_embeddings, x_dense, emb_dense, mask_dense, idx3)
        return out_masked_dense.reshape(B, N, D), out_unmasked

    # D is a multiple of 128 (or not foldable): natural, already-dense layout.
    emb3 = encoder_mask_emb.astype(dtype).reshape(1, 1, D)
    mask3 = bool_mask.astype(jnp.int32).reshape(B, N, 1)

    per_batch = (2 * N * D + Nu * D) * itemsize
    Bt = _choose_bt(B, per_batch)

    grid_spec = pl.GridSpec(
        grid=(B // Bt,),
        in_specs=[
            pl.BlockSpec((Bt, N, D), lambda b: (b, 0, 0)),
            pl.BlockSpec((1, 1, D), lambda b: (0, 0, 0)),
            pl.BlockSpec((Bt, N, 1), lambda b: (b, 0, 0)),
            pl.BlockSpec((Bt, Nu, 1), lambda b: (b, 0, 0)),
        ],
        out_specs=[
            pl.BlockSpec((Bt, N, D), lambda b: (b, 0, 0)),
            pl.BlockSpec((Bt, Nu, D), lambda b: (b, 0, 0)),
        ],
    )
    out_masked, out_unmasked = pl.pallas_call(
        _mask_kernel_wide,
        grid_spec=grid_spec,
        out_shape=(
            jax.ShapeDtypeStruct((B, N, D), dtype),
            jax.ShapeDtypeStruct((B, Nu, D), dtype),
        ),
        compiler_params=compiler_params,
    )(patch_embeddings, emb3, mask3, idx3)
    return out_masked, out_unmasked


# ------------------------------ Module wrapper --------------------------------
class Config:
    def __init__(self):
        self.masking_percentage = 0.5
        self.masking_strategy = "random"
        self.enc_embed_dim = 32
        self.patch_size = (4, 4)


class MaskPallas:
    def __init__(self, config: Config, key):
        self.config = config
        self.masking_percentage = config.masking_percentage
        self.masking_strategy = config.masking_strategy
        # torch.randn(D) * 0.02 semantics
        self.encoder_mask_emb = jax.random.normal(
            key, (config.enc_embed_dim,), dtype=jnp.float32) * 0.02
        self.patch_size = config.patch_size[0] ** 2

    def forward(self, patch_embeddings, rng_key):
        B, num_patches, patch_embedding_dim = patch_embeddings.shape
        total_patches_to_mask = int(self.masking_percentage * num_patches)

        # Glue: random permutation + boolean mask construction (plain JAX).
        rand = jax.random.uniform(rng_key, (B, num_patches))
        perm = jnp.argsort(rand, axis=1)
        masked_indices = perm[:, :total_patches_to_mask]
        unmasked_indices = perm[:, total_patches_to_mask:]

        batch_idx = jnp.arange(B)[:, None]
        bool_mask = jnp.zeros((B, num_patches), dtype=bool).at[
            batch_idx, masked_indices].set(True)

        # Hot path: masked substitution + gather inside the Pallas kernel.
        patch_embeddings_with_mask, unmasked_patches_only = _mask_pallas(
            patch_embeddings, self.encoder_mask_emb, bool_mask, unmasked_indices)

        masked_indices_list = [masked_indices[b] for b in range(B)]
        unmasked_indices_list = [unmasked_indices[b] for b in range(B)]
        return (patch_embeddings_with_mask, unmasked_patches_only, bool_mask,
                masked_indices_list, unmasked_indices_list)


# --------------------------------- Main ---------------------------------------
if __name__ == "__main__":
    key = jax.random.PRNGKey(0)
    k_param, k_x, k_perm = jax.random.split(key, 3)

    cfg = Config()
    B, num_patches, D = 2, 16, cfg.enc_embed_dim
    x = jax.random.normal(k_x, (B, num_patches, D), dtype=jnp.float32)

    mod = MaskPallas(cfg, k_param)
    out = mod.forward(x, k_perm)
    out_masked, out_unmasked, bool_mask, masked_list, unmasked_list = out
    jax.block_until_ready(out_masked)
    jax.block_until_ready(out_unmasked)

    # Reference (pure JAX) check of the kernel's semantics.
    k = int(cfg.masking_percentage * num_patches)
    rand = jax.random.uniform(k_perm, (B, num_patches))
    perm = jnp.argsort(rand, axis=1)
    unmasked_idx = perm[:, k:]
    ref_mask = jnp.zeros((B, num_patches), dtype=bool).at[
        jnp.arange(B)[:, None], perm[:, :k]].set(True)
    ref_masked = jnp.where(ref_mask[:, :, None],
                           mod.encoder_mask_emb[None, None, :], x)
    ref_unmasked = x[jnp.arange(B)[:, None], unmasked_idx]

    assert jnp.allclose(out_masked, ref_masked, atol=1e-5)
    assert jnp.allclose(out_unmasked, ref_unmasked, atol=1e-5)
    assert bool(jnp.all(bool_mask == ref_mask))

    print("KERNEL_OK")
</pallas_src>

<mosaic_0001>
module attributes {stable_mosaic.version = 11 : i64} {
  func.func @_mask_kernel_dense(%arg0: i32, %arg1: memref<1x16x32xf32, #tpu.memory_space<vmem>>, %arg2: memref<1x4x128xf32, #tpu.memory_space<vmem>>, %arg3: memref<1x4x128xf32, #tpu.memory_space<vmem>>, %arg4: memref<1x4x128xi8, #tpu.memory_space<vmem>>, %arg5: memref<1x8x1xi32, #tpu.memory_space<vmem>>, %arg6: memref<1x4x128xf32, #tpu.memory_space<vmem>>, %arg7: memref<1x8x32xf32, #tpu.memory_space<vmem>>) attributes {dimension_semantics = [#tpu.dimension_semantics<parallel>], iteration_bounds = array<i64: 2>, scalar_prefetch = 0 : i64, scratch_operands = 0 : i64, tpu.core_type = #tpu.core_type<tc>, window_params = [{transform_indices = @transform_0, window_bounds = array<i64: 1, 16, 32>}, {transform_indices = @transform_1, window_bounds = array<i64: 1, 4, 128>}, {pipeline_mode = #tpu.pipeline_mode<synchronous>, transform_indices = @transform_2, window_bounds = array<i64: 1, 4, 128>}, {transform_indices = @transform_3, window_bounds = array<i64: 1, 4, 128>}, {transform_indices = @transform_4, window_bounds = array<i64: 1, 8, 1>}, {transform_indices = @transform_5, window_bounds = array<i64: 1, 4, 128>}, {transform_indices = @transform_6, window_bounds = array<i64: 1, 8, 32>}]} {
    %c0 = arith.constant 0 : index
    %c0_0 = arith.constant 0 : index
    %c0_1 = arith.constant 0 : index
    %0 = vector.load %arg4[%c0, %c0_0, %c0_1] : memref<1x4x128xi8, #tpu.memory_space<vmem>>, vector<1x4x128xi8>
    %c0_i8 = arith.constant 0 : i8
    %1 = vector.broadcast %c0_i8 : i8 to vector<1x4x128xi8>
    %2 = arith.cmpi ne, %0, %1 : vector<1x4x128xi8>
    %c0_2 = arith.constant 0 : index
    %c0_3 = arith.constant 0 : index
    %c0_4 = arith.constant 0 : index
    %3 = vector.load %arg3[%c0_2, %c0_3, %c0_4] : memref<1x4x128xf32, #tpu.memory_space<vmem>>, vector<1x4x128xf32>
    %c0_5 = arith.constant 0 : index
    %c0_6 = arith.constant 0 : index
    %c0_7 = arith.constant 0 : index
    %4 = vector.load %arg2[%c0_5, %c0_6, %c0_7] : memref<1x4x128xf32, #tpu.memory_space<vmem>>, vector<1x4x128xf32>
    %5 = arith.select %2, %3, %4 : vector<1x4x128xi1>, vector<1x4x128xf32>
    %c0_8 = arith.constant 0 : index
    %c0_9 = arith.constant 0 : index
    %c0_10 = arith.constant 0 : index
    %6 = vector.load %arg6[%c0_8, %c0_9, %c0_10] : memref<1x4x128xf32, #tpu.memory_space<vmem>>, vector<1x4x128xf32>
    tpu.vector_store %arg6[%c0_8, %c0_9, %c0_10], %5 {strides = array<i32>} : memref<1x4x128xf32, #tpu.memory_space<vmem>>, vector<1x4x128xf32>,
    %c0_11 = arith.constant 0 : index
    %c0_12 = arith.constant 0 : index
    %c0_13 = arith.constant 0 : index
    %7 = vector.load %arg1[%c0_11, %c0_12, %c0_13] : memref<1x16x32xf32, #tpu.memory_space<vmem>>, vector<1x16x32xf32>
    %c0_14 = arith.constant 0 : index
    %c0_15 = arith.constant 0 : index
    %c0_16 = arith.constant 0 : index
    %8 = vector.load %arg5[%c0_14, %c0_15, %c0_16] : memref<1x8x1xi32, #tpu.memory_space<vmem>>, vector<1x8x1xi32>
    %9 = tpu.iota {dimensions = array<i32: 2>} : vector<1x1x16xi32>
    %10 = vector.broadcast %8 : vector<1x8x1xi32> to vector<1x8x16xi32>
    %11 = vector.broadcast %9 : vector<1x1x16xi32> to vector<1x8x16xi32>
    %12 = arith.cmpi eq, %10, %11 : vector<1x8x16xi32>
    %13 = arith.extui %12 : vector<1x8x16xi1> to vector<1x8x16xi32>
    %14 = arith.sitofp %13 : vector<1x8x16xi32> to vector<1x8x16xf32>
    %cst = arith.constant dense<0.000000e+00> : vector<1x8x32xf32>
    %15 = tpu.matmul %14, %7, %cst {dimension_numbers = #tpu.dot_dimension_numbers<[2], [1], [1], [2], [0, 0, 0, 1, 1, 2], [0], [0]>} : vector<1x8x16xf32>, vector<1x16x32xf32>, vector<1x8x32xf32> -> vector<1x8x32xf32>
    %c0_17 = arith.constant 0 : index
    %c0_18 = arith.constant 0 : index
    %c0_19 = arith.constant 0 : index
    %16 = vector.load %arg7[%c0_17, %c0_18, %c0_19] : memref<1x8x32xf32, #tpu.memory_space<vmem>>, vector<1x8x32xf32>
    tpu.vector_store %arg7[%c0_17, %c0_18, %c0_19], %15 {strides = array<i32>} : memref<1x8x32xf32, #tpu.memory_space<vmem>>, vector<1x8x32xf32>,
    return
  }
  func.func @transform_0(%arg0: i32) -> (i32, i32, i32) {
    %c0_i32 = arith.constant 0 : i32
    %c0_i32_0 = arith.constant 0 : i32
    %c0_i32_1 = arith.constant 0 : i32
    return %arg0, %c0_i32, %c0_i32_0 : i32, i32, i32
  }
  func.func @transform_1(%arg0: i32) -> (i32, i32, i32) {
    %c0_i32 = arith.constant 0 : i32
    %c0_i32_0 = arith.constant 0 : i32
    %c0_i32_1 = arith.constant 0 : i32
    return %arg0, %c0_i32, %c0_i32_0 : i32, i32, i32
  }
  func.func @transform_2(%arg0: i32) -> (i32, i32, i32) {
    %c0_i32 = arith.constant 0 : i32
    %c0_i32_0 = arith.constant 0 : i32
    %c0_i32_1 = arith.constant 0 : i32
    %c0_i32_2 = arith.constant 0 : i32
    return %c0_i32, %c0_i32_0, %c0_i32_1 : i32, i32, i32
  }
  func.func @transform_3(%arg0: i32) -> (i32, i32, i32) {
    %c0_i32 = arith.constant 0 : i32
    %c0_i32_0 = arith.constant 0 : i32
    %c0_i32_1 = arith.constant 0 : i32
    return %arg0, %c0_i32, %c0_i32_0 : i32, i32, i32
  }
  func.func @transform_4(%arg0: i32) -> (i32, i32, i32) {
    %c0_i32 = arith.constant 0 : i32
    %c0_i32_0 = arith.constant 0 : i32
    %c0_i32_1 = arith.constant 0 : i32
    return %arg0, %c0_i32, %c0_i32_0 : i32, i32, i32
  }
  func.func @transform_5(%arg0: i32) -> (i32, i32, i32) {
    %c0_i32 = arith.constant 0 : i32
    %c0_i32_0 = arith.constant 0 : i32
    %c0_i32_1 = arith.constant 0 : i32
    return %arg0, %c0_i32, %c0_i32_0 : i32, i32, i32
  }
  func.func @transform_6(%arg0: i32) -> (i32, i32, i32) {
    %c0_i32 = arith.constant 0 : i32
    %c0_i32_0 = arith.constant 0 : i32
    %c0_i32_1 = arith.constant 0 : i32
    return %arg0, %c0_i32, %c0_i32_0 : i32, i32, i32
  }
}

</mosaic_0001>

<llo_original>
// kernel: tpu_custom_call.1
$region0: #{tpu_custom_call.1}
  #allocation0 [shape = 'u32[]', space=smem, size = 0x4, offset = 0x4, fixed_abs, tag = 'smem constant byte address 0x4 - core index']
  #allocation1 [shape = 'u32[144,128]{1,0:T(1,128)}', space=vmem, size = 0x12000, scoped, tag = 'internal scratch']
  %s0 = inlined_call_operand.hbm [shape: f32[2,16,32], index: 0, kind: input, shape index: {}]
  %s1 = inlined_call_operand.vmem [shape: f32[2,4,128], index: 1, kind: input, shape index: {}]
  %s2 = inlined_call_operand.vmem [shape: f32[1,4,128], index: 2, kind: input, shape index: {}]
  %s3 = inlined_call_operand.vmem [shape: s8[2,4,128], index: 3, kind: input, shape index: {}]
  %s4 = inlined_call_operand.vmem [shape: s32[2,8,1], index: 4, kind: input, shape index: {}]
  %s5 = inlined_call_operand.hbm [shape: f32[2,4,128], index: 5, kind: output, shape index: {0}]
  %s6 = inlined_call_operand.hbm [shape: f32[2,8,32], index: 6, kind: output, shape index: {1}]
  %7 = xla_tuple %s5, %s6
  %s8 = sld [smem:[#allocation0]]
  $region65: #{tpu_custom_call.1} parent=0
    _
  %s10 = ssub.s32 1, %s8
  %s11 = scalar_select 0, %s10, %s8
  $region1: #{tpu_custom_call.1} parent=0
    #allocation2 [shape = 'u8[16384]{0}', space=vmem, size = 0x4000, scoped, tag = 'input window, operand 0']
    #allocation3 [shape = 's32[2]{0}', space=sflag, size = 0x8, scoped, tag = 'scoped memory for tpu_custom_call.1']
    #allocation4 [shape = 's32[2]{0}', space=sflag, size = 0x8, scoped, tag = 'scoped memory for tpu_custom_call.1']
    #allocation5 [shape = 'u8[4096]{0}', space=vmem, size = 0x1000, scoped, tag = 'output window, operand 0']
    #allocation6 [shape = 'u8[8192]{0}', space=vmem, size = 0x2000, scoped, tag = 'output window, operand 1']
    #allocation7 [shape = 's32[2]{0}', space=sflag, size = 0x8, scoped, tag = 'scoped memory for tpu_custom_call.1']
    %12 = vsyncpa [#allocation3], 0
    %s13 = scalar_lea.sflag [#allocation3], 1
    %14 = vsyncpa %s13, 0
    %15 = vsyncpa [#allocation4], 0
    %s16 = scalar_lea.sflag [#allocation4], 1
    %17 = vsyncpa %s16, 0
    %18 = vsyncpa [#allocation7], 0
    %s19 = scalar_lea.sflag [#allocation7], 1
    %20 = vsyncpa %s19, 0
    loop: start=0, step=1, limit=4
    $region2: #{tpu_custom_call.1} parent=1 // loop_pre_header
      _
    $region3: #{tpu_custom_call.1} parent=1 // loop_header
      %s22 = sphi 0, %s26
      %p23 = scmp.ge.s32.totalorder %s22, 4
      %s32 = sphi 0, %s34
      %s35 = sphi 0, %s32
      %s36 = sphi 0, %s35
      %s52 = sphi 0, %s36
      %s58 = sphi 0, %s60
      %s61 = sphi 0, %s58
      %s62 = sphi 0, %s61
      %s78 = sphi 0, %s62
      %s82 = sphi 0, %s82
      %s84 = sphi 0, %s82
      %s85 = sphi 0, %s84
      %s99 = sphi 0, %s85
      %s105 = sphi 0, %s107
      %s108 = sphi 0, %s105
      %s109 = sphi 0, %s108
      %s125 = sphi 0, %s109
      %s131 = sphi 0, %s133
      %s134 = sphi 0, %s131
      %s135 = sphi 0, %s134
      %s151 = sphi 0, %s135
      %s157 = sphi 0, %s159
      %s160 = sphi 0, %s157
      %s161 = sphi 0, %s160
      %s177 = sphi 0, %s161
      %s183 = sphi 0, %s185
      %s186 = sphi 0, %s183
      %s187 = sphi 0, %s186
      %s203 = sphi 0, %s187
    $region4: #{tpu_custom_call.1} parent=1 // loop_header_branch
      %25 = sbr.rel (%p23) target = $region8
    $region5: #{tpu_custom_call.1} parent=1 // loop_body
      %s27 = ssub.s32 %s22, 1
      %s28 = ssub.s32 %s22, 2
      %s29 = sadd.s32 %s22, 1
      %s30 = ssub.s32 %s22, %s29
      %p31 = scmp.eq.s32.totalorder %s30, 0
      %s33 = sadd.s32 %s32, 1
      %s34 = scalar_select %p31, %s32, %s33
      %p37 = pneg %p31
      %p38 = scmp.eq.s32.totalorder %s22, 1
      %p39 = por %p37, %p38
      %p40 = scmp.ne.s32.totalorder %s32, %s35
      %p41 = scmp.eq.s32.totalorder %s22, 0
      %p42 = por %p40, %p41
      %p43 = scmp.ne.s32.totalorder %s32, %s35
      %p44 = scmp.eq.s32.totalorder %s27, 1
      %p45 = por %p43, %p44
      %p46 = scmp.ne.s32.totalorder %s35, %s36
      %p47 = scmp.eq.s32.totalorder %s27, 0
      %p48 = por %p46, %p47
      %p49 = scmp.ne.s32.totalorder %s35, %s36
      %p50 = scmp.eq.s32.totalorder %s28, 1
      %p51 = por %p49, %p50
      %p53 = scmp.ne.s32.totalorder %s36, %s52
      %p54 = scmp.eq.s32.totalorder %s28, 0
      %p55 = por %p53, %p54
      %s56 = ssub.s32 %s22, %s29
      %p57 = scmp.eq.s32.totalorder %s56, 0
      %s59 = sadd.s32 %s58, 1
      %s60 = scalar_select %p57, %s58, %s59
      %p63 = pneg %p57
      %p64 = scmp.eq.s32.totalorder %s22, 1
      %p65 = por %p63, %p64
      %p66 = scmp.ne.s32.totalorder %s58, %s61
      %p67 = scmp.eq.s32.totalorder %s22, 0
      %p68 = por %p66, %p67
      %p69 = scmp.ne.s32.totalorder %s58, %s61
      %p70 = scmp.eq.s32.totalorder %s27, 1
      %p71 = por %p69, %p70
      %p72 = scmp.ne.s32.totalorder %s61, %s62
      %p73 = scmp.eq.s32.totalorder %s27, 0
      %p74 = por %p72, %p73
      %p75 = scmp.ne.s32.totalorder %s61, %s62
      %p76 = scmp.eq.s32.totalorder %s28, 1
      %p77 = por %p75, %p76
      %p79 = scmp.ne.s32.totalorder %s62, %s78
      %p80 = scmp.eq.s32.totalorder %s28, 0
      %p81 = por %p79, %p80
      %s83 = sadd.s32 %s82, 1
      %p86 = scmp.eq.s32.totalorder %s22, 1
      %p87 = scmp.ne.s32.totalorder %s82, %s84
      %p88 = scmp.eq.s32.totalorder %s22, 0
      %p89 = por %p87, %p88
      %p90 = scmp.ne.s32.totalorder %s82, %s84
      %p91 = scmp.eq.s32.totalorder %s27, 1
      %p92 = por %p90, %p91
      %p93 = scmp.ne.s32.totalorder %s84, %s85
      %p94 = scmp.eq.s32.totalorder %s27, 0
      %p95 = por %p93, %p94
      %p96 = scmp.ne.s32.totalorder %s84, %s85
      %p97 = scmp.eq.s32.totalorder %s28, 1
      %p98 = por %p96, %p97
      %p100 = scmp.ne.s32.totalorder %s85, %s99
      %p101 = scmp.eq.s32.totalorder %s28, 0
      %p102 = por %p100, %p101
      %s103 = ssub.s32 %s22, %s29
      %p104 = scmp.eq.s32.totalorder %s103, 0
      %s106 = sadd.s32 %s105, 1
      %s107 = scalar_select %p104, %s105, %s106
      %p110 = pneg %p104
      %p111 = scmp.eq.s32.totalorder %s22, 1
      %p112 = por %p110, %p111
      %p113 = scmp.ne.s32.totalorder %s105, %s108
      %p114 = scmp.eq.s32.totalorder %s22, 0
      %p115 = por %p113, %p114
      %p116 = scmp.ne.s32.totalorder %s105, %s108
      %p117 = scmp.eq.s32.totalorder %s27, 1
      %p118 = por %p116, %p117
      %p119 = scmp.ne.s32.totalorder %s108, %s109
      %p120 = scmp.eq.s32.totalorder %s27, 0
      %p121 = por %p119, %p120
      %p122 = scmp.ne.s32.totalorder %s108, %s109
      %p123 = scmp.eq.s32.totalorder %s28, 1
      %p124 = por %p122, %p123
      %p126 = scmp.ne.s32.totalorder %s109, %s125
      %p127 = scmp.eq.s32.totalorder %s28, 0
      %p128 = por %p126, %p127
      %s129 = ssub.s32 %s22, %s29
      %p130 = scmp.eq.s32.totalorder %s129, 0
      %s132 = sadd.s32 %s131, 1
      %s133 = scalar_select %p130, %s131, %s132
      %p136 = pneg %p130
      %p137 = scmp.eq.s32.totalorder %s22, 1
      %p138 = por %p136, %p137
      %p139 = scmp.ne.s32.totalorder %s131, %s134
      %p140 = scmp.eq.s32.totalorder %s22, 0
      %p141 = por %p139, %p140
      %p142 = scmp.ne.s32.totalorder %s131, %s134
      %p143 = scmp.eq.s32.totalorder %s27, 1
      %p144 = por %p142, %p143
      %p145 = scmp.ne.s32.totalorder %s134, %s135
      %p146 = scmp.eq.s32.totalorder %s27, 0
      %p147 = por %p145, %p146
      %p148 = scmp.ne.s32.totalorder %s134, %s135
      %p149 = scmp.eq.s32.totalorder %s28, 1
      %p150 = por %p148, %p149
      %p152 = scmp.ne.s32.totalorder %s135, %s151
      %p153 = scmp.eq.s32.totalorder %s28, 0
      %p154 = por %p152, %p153
      %s155 = ssub.s32 %s22, %s29
      %p156 = scmp.eq.s32.totalorder %s155, 0
      %s158 = sadd.s32 %s157, 1
      %s159 = scalar_select %p156, %s157, %s158
      %p162 = pneg %p156
      %p163 = scmp.eq.s32.totalorder %s22, 1
      %p164 = por %p162, %p163
      %p165 = scmp.ne.s32.totalorder %s157, %s160
      %p166 = scmp.eq.s32.totalorder %s22, 0
      %p167 = por %p165, %p166
      %p168 = scmp.ne.s32.totalorder %s157, %s160
      %p169 = scmp.eq.s32.totalorder %s27, 1
      %p170 = por %p168, %p169
      %p171 = scmp.ne.s32.totalorder %s160, %s161
      %p172 = scmp.eq.s32.totalorder %s27, 0
      %p173 = por %p171, %p172
      %p174 = scmp.ne.s32.totalorder %s160, %s161
      %p175 = scmp.eq.s32.totalorder %s28, 1
      %p176 = por %p174, %p175
      %p178 = scmp.ne.s32.totalorder %s161, %s177
      %p179 = scmp.eq.s32.totalorder %s28, 0
      %p180 = por %p178, %p179
      %s181 = ssub.s32 %s22, %s29
      %p182 = scmp.eq.s32.totalorder %s181, 0
      %s184 = sadd.s32 %s183, 1
      %s185 = scalar_select %p182, %s183, %s184
      %p188 = pneg %p182
      %p189 = scmp.eq.s32.totalorder %s22, 1
      %p190 = por %p188, %p189
      %p191 = scmp.ne.s32.totalorder %s183, %s186
      %p192 = scmp.eq.s32.totalorder %s22, 0
      %p193 = por %p191, %p192
      %p194 = scmp.ne.s32.totalorder %s183, %s186
      %p195 = scmp.eq.s32.totalorder %s27, 1
      %p196 = por %p194, %p195
      %p197 = scmp.ne.s32.totalorder %s186, %s187
      %p198 = scmp.eq.s32.totalorder %s27, 0
      %p199 = por %p197, %p198
      %p200 = scmp.ne.s32.totalorder %s186, %s187
      %p201 = scmp.eq.s32.totalorder %s28, 1
      %p202 = por %p200, %p201
      %p204 = scmp.ne.s32.totalorder %s187, %s203
      %p205 = scmp.eq.s32.totalorder %s28, 0
      %p206 = por %p204, %p205
      %p207 = scmp.le.s32.totalorder 1, %s22
      %p208 = scmp.lt.s32.totalorder %s22, 3
      %p209 = pnand %p207, %p208
      %p210 = pneg %p209
      // Predicated region
      $region9: #{tpu_custom_call.1} parent=5 // pred_check
        _
      $region10: #{tpu_custom_call.1} parent=5 // pred_check_branch
        %212 = sbr.rel (%p209) target = $region12
      $region11: #{tpu_custom_call.1} parent=5 // pred_region
        %s213 = ssub.s32 %s22, 1
        // Predicated region
        $region13: #{tpu_custom_call.1} parent=11 // pred_check
          %p214 = pneg %p95
        $region14: #{tpu_custom_call.1} parent=11 // pred_check_branch
          %216 = sbr.rel (%p214) target = $region16
        $region15: #{tpu_custom_call.1} parent=11 // pred_region
          _
        $region16: #{tpu_custom_call.1} parent=11 // pred_fallthru
          _
      $region12: #{tpu_custom_call.1} parent=5 // pred_fallthru
        _
      %p217 = scmp.lt.s32.totalorder %s22, 2
      // Predicated region
      $region17: #{tpu_custom_call.1} parent=5 // pred_check
        %p218 = pneg %p217
      $region18: #{tpu_custom_call.1} parent=5 // pred_check_branch
        %220 = sbr.rel (%p218) target = $region20
      $region19: #{tpu_custom_call.1} parent=5 // pred_region
        // Predicated region
        $region21: #{tpu_custom_call.1} parent=19 // pred_check
          %p221 = pneg %p42
        $region22: #{tpu_custom_call.1} parent=19 // pred_check_branch
          %223 = sbr.rel (%p221) target = $region24
        $region23: #{tpu_custom_call.1} parent=19 // pred_region
          %s224 = sand.u32 %s32, 1
          %s225 = scalar_lea.sflag [#allocation3], %s224
          %s226 = sand.u32 %s32, 1
          %s227 = smul.addr %s226, 16
          %s228 = scalar_lea.vmem [#allocation2], %s227
          %s230 = ssub.s32 256, 256
          %231 = vsyncadd %s225, %s230
          %s232 = smul.addr %s22, 2
          %s233 = smul.addr %s232, 128
          %s234 = scalar_lea.hbm %s0, %s233
          %s235 = sshll.u32 %s228, 4
          %s236 = int_to_ptr.vmem [resolvable:$true] %s235
          %241 = dma.hbm_to_vmem [thread:$0]  %s234, 256, %s236, %s225, 128, 128, 8
        $region24: #{tpu_custom_call.1} parent=19 // pred_fallthru
          _
        // Predicated region
        $region25: #{tpu_custom_call.1} parent=19 // pred_check
          %p242 = pneg %p68
        $region26: #{tpu_custom_call.1} parent=19 // pred_check_branch
          %244 = sbr.rel (%p242) target = $region28
        $region27: #{tpu_custom_call.1} parent=19 // pred_region
          %p245 = scmp.lt.s32.totalorder %s22, 1
          %s246 = scalar_select %p245, %s22, 1
          %s247 = smul.addr %s246, 4
          %s248 = scalar_lea.vmem %s1, %s247
        $region28: #{tpu_custom_call.1} parent=19 // pred_fallthru
          _
        // Predicated region
        $region29: #{tpu_custom_call.1} parent=19 // pred_check
          %p249 = pneg %p115
        $region30: #{tpu_custom_call.1} parent=19 // pred_check_branch
          %251 = sbr.rel (%p249) target = $region32
        $region31: #{tpu_custom_call.1} parent=19 // pred_region
          %p252 = scmp.lt.s32.totalorder %s22, 1
          %s253 = scalar_select %p252, %s22, 1
          %s254 = scalar_lea.vmem %s3, %s253
        $region32: #{tpu_custom_call.1} parent=19 // pred_fallthru
          _
        // Predicated region
        $region33: #{tpu_custom_call.1} parent=19 // pred_check
          %p255 = pneg %p141
        $region34: #{tpu_custom_call.1} parent=19 // pred_check_branch
          %257 = sbr.rel (%p255) target = $region36
        $region35: #{tpu_custom_call.1} parent=19 // pred_region
          %p258 = scmp.lt.s32.totalorder %s22, 1
          %s259 = scalar_select %p258, %s22, 1
          %s260 = smul.addr %s259, 8
          %s261 = scalar_lea.vmem %s4, %s260
        $region36: #{tpu_custom_call.1} parent=19 // pred_fallthru
          _
      $region20: #{tpu_custom_call.1} parent=5 // pred_fallthru
        _
      %p262 = scmp.le.s32.totalorder 1, %s22
      %p263 = scmp.lt.s32.totalorder %s22, 3
      %p264 = pnand %p262, %p263
      %p265 = pneg %p264
      // Predicated region
      $region37: #{tpu_custom_call.1} parent=5 // pred_check
        _
      $region38: #{tpu_custom_call.1} parent=5 // pred_check_branch
        %267 = sbr.rel (%p264) target = $region40
      $region39: #{tpu_custom_call.1} parent=5 // pred_region
        %s268 = ssub.s32 %s22, 1
        %s269 = sand.u32 %s35, 1
        %s270 = scalar_lea.sflag [#allocation3], %s269
        %s271 = sand.u32 %s35, 1
        %s272 = smul.addr %s271, 16
        %s273 = scalar_lea.vmem [#allocation2], %s272
        // Predicated region
        $region41: #{tpu_custom_call.1} parent=39 // pred_check
          %p274 = pneg %p48
        $region42: #{tpu_custom_call.1} parent=39 // pred_check_branch
          %276 = sbr.rel (%p274) target = $region44
        $region43: #{tpu_custom_call.1} parent=39 // pred_region
          %277 = dma.done %s270, 256
        $region44: #{tpu_custom_call.1} parent=39 // pred_fallthru
          _
        %s278 = sand.u32 %s35, 1
        %s279 = scalar_lea.sflag [#allocation3], %s278
        %s280 = sand.u32 %s35, 1
        %s281 = smul.addr %s280, 16
        %s282 = scalar_lea.vmem [#allocation2], %s281
        %p283 = pneg %p48
        %p284 = pneg %p45
        %p285 = scmp.lt.s32.totalorder %s27, 1
        %s286 = scalar_select %p285, %s27, 1
        %s287 = smul.addr %s286, 4
        %s288 = scalar_lea.vmem %s1, %s287
        %p289 = pneg %p74
        %p290 = pneg %p71
        %p291 = pneg %p95
        %p292 = pneg %p92
        %p293 = scmp.lt.s32.totalorder %s27, 1
        %s294 = scalar_select %p293, %s27, 1
        %s295 = scalar_lea.vmem %s3, %s294
        %p296 = pneg %p121
        %p297 = pneg %p118
        %p298 = scmp.lt.s32.totalorder %s27, 1
        %s299 = scalar_select %p298, %s27, 1
        %s300 = smul.addr %s299, 8
        %s301 = scalar_lea.vmem %s4, %s300
        %p302 = pneg %p147
        %p303 = pneg %p144
        %p304 = pneg %p173
        %p305 = pneg %p170
        %s306 = sand.u32 %s160, 1
        %s307 = scalar_lea.sflag [#allocation4], %s306
        %s308 = sand.u32 %s160, 1
        %s309 = smul.addr %s308, 4
        %s310 = scalar_lea.vmem [#allocation5], %s309
        %p311 = pneg %p199
        %p312 = pneg %p196
        %s313 = sand.u32 %s186, 1
        %s314 = scalar_lea.sflag [#allocation7], %s313
        %s315 = sand.u32 %s186, 1
        %s316 = smul.addr %s315, 8
        %s317 = scalar_lea.vmem [#allocation6], %s316
        %p318 = scmp.lt.s32.totalorder %s27, 1
        %s319 = scalar_select %p318, %s27, 1
        %s320 = smul.addr %s319, 4
        %s321 = scalar_lea.vmem %s1, %s320
        %p322 = scmp.lt.s32.totalorder %s27, 1
        %s323 = scalar_select %p322, %s27, 1
        %s324 = scalar_lea.vmem %s3, %s323
        %p325 = scmp.lt.s32.totalorder %s27, 1
        %s326 = scalar_select %p325, %s27, 1
        %s327 = smul.addr %s326, 8
        %s328 = scalar_lea.vmem %s4, %s327
        %v331 = vld [vmem:[%s324] sm:$0x1]
        %vm332 = vnez %v331
        %v333 = vld [vmem:[%s2] sm:$0xf]
        %v334 = vld [vmem:[%s321] sm:$0xf]
        %v335 = vsel %vm332, 16843009, 0
        %v336 = vunpack.c.0.s8 %v335
        %vm337 = vcmp.ne.s32.totalorder %v336, 0
        %v338 = vsel %vm337, %v333, %v334
        %339 = vst [vmem:[%s310] sm:$0xf] %v338
        %v340 = vld [vmem:[%s273] sm:$0xff]
        %v341 = vld [vmem:[%s273 + $0x8] sm:$0xff]
        %v342 = vld [vmem:[%s328] sm:$0xff]
        %v343 = vlaneseq
        %v344 = vand.u32 %v343, 127
        %345 = vset.pattern.permute.xlu0 0
        %346 = vperm.xlu0 %345, %v342
        %v347 = vpop.permute.xlu0 %346
        %vm348 = vcmp.eq.s32.totalorder %v347, %v344
        %v349 = vsel %vm348, 1, 0
        %v350 = vcvt.s32.f32 %v349
        %vm351 = vcmask 130048
        %v353 = vsel %vm351, %v350, 0
        %355 = vmatprep.subr.mxu0 0.0
        %356 = vmatpush1.msra.mxu0 %v340
        %357 = vmatprep.subr.mxu0 0.0
        %358 = vmatpush1.msra.mxu0 %v341
        %359 = vmatprep.subr.mxu0 0.0
        %360 = vmatpush1.msra.mxu0 0.0
        %361 = vmatprep.subr.mxu0 0.0
        %362 = vmatpush1.msra.mxu0 0.0
        %363 = vmatprep.subr.mxu0 0.0
        %364 = vmatpush1.msra.mxu0 0.0
        %365 = vmatprep.subr.mxu0 0.0
        %366 = vmatpush1.msra.mxu0 0.0
        %367 = vmatprep.subr.mxu0 0.0
        %368 = vmatpush1.msra.mxu0 0.0
        %369 = vmatprep.subr.mxu0 0.0
        %370 = vmatpush1.msra.mxu0 0.0
        %371 = vmatprep.subr.mxu0 0.0
        %372 = vmatpush1.msra.mxu0 0.0
        %373 = vmatprep.subr.mxu0 0.0
        %374 = vmatpush1.msra.mxu0 0.0
        %375 = vmatprep.subr.mxu0 0.0
        %376 = vmatpush1.msra.mxu0 0.0
        %377 = vmatprep.subr.mxu0 0.0
        %378 = vmatpush1.msra.mxu0 0.0
        %379 = vmatprep.subr.mxu0 0.0
        %380 = vmatpush1.msra.mxu0 0.0
        %381 = vmatprep.subr.mxu0 0.0
        %382 = vmatpush1.msra.mxu0 0.0
        %383 = vmatprep.subr.mxu0 0.0
        %384 = vmatpush1.msra.mxu0 0.0
        %385 = vmatprep.subr.mxu0 0.0
        %386 = vmatpush1.msra.mxu0 0.0
        %387 = vmatprep.subr.mxu0 0.0
        %388 = vmatpush1.msra.mxu0 0.0
        %389 = vmatprep.subr.mxu0 0.0
        %390 = vmatpush1.msra.mxu0 0.0
        %391 = vmatprep.subr.mxu0 0.0
        %392 = vmatpush1.msra.mxu0 0.0
        %393 = vmatprep.subr.mxu0 0.0
        %394 = vmatpush1.msra.mxu0 0.0
        %395 = vmatprep.subr.mxu0 0.0
        %396 = vmatpush1.msra.mxu0 0.0
        %397 = vmatprep.subr.mxu0 0.0
        %398 = vmatpush1.msra.mxu0 0.0
        %399 = vmatprep.subr.mxu0 0.0
        %400 = vmatpush1.msra.mxu0 0.0
        %401 = vmatprep.subr.mxu0 0.0
        %402 = vmatpush1.msra.mxu0 0.0
        %403 = vmatprep.subr.mxu0 0.0
        %404 = vmatpush1.msra.mxu0 0.0
        %405 = vmatprep.subr.mxu0 0.0
        %406 = vmatpush1.msra.mxu0 0.0
        %407 = vmatprep.subr.mxu0 0.0
        %408 = vmatpush1.msra.mxu0 0.0
        %409 = vmatprep.subr.mxu0 0.0
        %410 = vmatpush1.msra.mxu0 0.0
        %411 = vmatprep.subr.mxu0 0.0
        %412 = vmatpush1.msra.mxu0 0.0
        %413 = vmatprep.subr.mxu0 0.0
        %414 = vmatpush1.msra.mxu0 0.0
        %415 = vmatprep.subr.mxu0 0.0
        %416 = vmatpush1.msra.mxu0 0.0
        %417 = vmatprep.subr.mxu0 0.0
        %418 = vmatpush1.msra.mxu0 0.0
        %419 = vmatprep.mubr.f32.mxu0 0.0
        %420 = vmatmul.mubr.f32.gmra.mrb[0].mxu0 %v353
        %v421 = vpop.f32.mrb[0].mxu0
        %v422 = vadd.f32 0.0, %v421
        %v423 = vpop.f32.mrb[0].mxu0
        %424 = vdwg.mxu0
        %vm425 = vcmask 261120
        %426 = vst.msk [vmem:[%s317] sm:$0xff] %vm425, %v422
        %s427 = sand.u32 %s160, 1
        %s428 = scalar_lea.sflag [#allocation4], %s427
        %s429 = sand.u32 %s160, 1
        %s430 = smul.addr %s429, 4
        %s431 = scalar_lea.vmem [#allocation5], %s430
        %s432 = sand.u32 %s186, 1
        %s433 = scalar_lea.sflag [#allocation7], %s432
        %s434 = sand.u32 %s186, 1
        %s435 = smul.addr %s434, 8
        %s436 = scalar_lea.vmem [#allocation6], %s435
        // Predicated region
        $region45: #{tpu_custom_call.1} parent=39 // pred_check
          %p437 = pneg %p170
        $region46: #{tpu_custom_call.1} parent=39 // pred_check_branch
          %439 = sbr.rel (%p437) target = $region48
        $region47: #{tpu_custom_call.1} parent=39 // pred_region
          %s441 = ssub.s32 64, 64
          %442 = vsyncadd %s428, %s441
          %s443 = smul.addr %s27, 64
          %s444 = scalar_lea.hbm %s5, %s443
          %s446 = sshll.u32 %s431, 4
          %s447 = int_to_ptr.vmem [resolvable:$true] %s446
          %449 = dma.vmem_to_hbm [thread:$0]  %s447, 64, %s444, %s428
        $region48: #{tpu_custom_call.1} parent=39 // pred_fallthru
          _
        // Predicated region
        $region49: #{tpu_custom_call.1} parent=39 // pred_check
          %p450 = pneg %p196
        $region50: #{tpu_custom_call.1} parent=39 // pred_check_branch
          %452 = sbr.rel (%p450) target = $region52
        $region51: #{tpu_custom_call.1} parent=39 // pred_region
          %s454 = ssub.s32 128, 128
          %455 = vsyncadd %s433, %s454
          %s456 = smul.addr %s27, 128
          %s457 = scalar_lea.hbm %s6, %s456
          %s459 = sshll.u32 %s436, 4
          %s460 = int_to_ptr.vmem [resolvable:$true] %s459
          %462 = dma.vmem_to_hbm [thread:$0]  %s460, 128, %s457, %s433
        $region52: #{tpu_custom_call.1} parent=39 // pred_fallthru
          _
      $region40: #{tpu_custom_call.1} parent=5 // pred_fallthru
        _
      %p463 = scmp.le.s32.totalorder 2, %s22
      // Predicated region
      $region53: #{tpu_custom_call.1} parent=5 // pred_check
        %p464 = pneg %p463
      $region54: #{tpu_custom_call.1} parent=5 // pred_check_branch
        %466 = sbr.rel (%p464) target = $region56
      $region55: #{tpu_custom_call.1} parent=5 // pred_region
        %s467 = ssub.s32 %s22, 2
        // Predicated region
        $region57: #{tpu_custom_call.1} parent=55 // pred_check
          %p468 = pneg %p176
        $region58: #{tpu_custom_call.1} parent=55 // pred_check_branch
          %470 = sbr.rel (%p468) target = $region60
        $region59: #{tpu_custom_call.1} parent=55 // pred_region
          %s471 = sand.u32 %s161, 1
          %s472 = scalar_lea.sflag [#allocation4], %s471
          %s473 = sand.u32 %s161, 1
          %s474 = smul.addr %s473, 4
          %s475 = scalar_lea.vmem [#allocation5], %s474
          %476 = dma.done %s472, 64
        $region60: #{tpu_custom_call.1} parent=55 // pred_fallthru
          _
        // Predicated region
        $region61: #{tpu_custom_call.1} parent=55 // pred_check
          %p477 = pneg %p202
        $region62: #{tpu_custom_call.1} parent=55 // pred_check_branch
          %479 = sbr.rel (%p477) target = $region64
        $region63: #{tpu_custom_call.1} parent=55 // pred_region
          %s480 = sand.u32 %s187, 1
          %s481 = scalar_lea.sflag [#allocation7], %s480
          %s482 = sand.u32 %s187, 1
          %s483 = smul.addr %s482, 8
          %s484 = scalar_lea.vmem [#allocation6], %s483
          %485 = dma.done %s481, 128
        $region64: #{tpu_custom_call.1} parent=55 // pred_fallthru
          _
      $region56: #{tpu_custom_call.1} parent=5 // pred_fallthru
        _
    $region6: #{tpu_custom_call.1} parent=1 // loop_footer
      %s26 = sadd.s32 1, %s22
    $region7: #{tpu_custom_call.1} parent=1 // loop_footer_branch
      %21 = sbr.rel target = $region3
    $region8: #{tpu_custom_call.1} parent=1 // loop_exit
      _
    %486 = vsyncpa [#allocation3], 1
    %s487 = scalar_lea.sflag [#allocation3], 1
    %488 = vsyncpa %s487, 1
    %489 = vsyncpa [#allocation4], 1
    %s490 = scalar_lea.sflag [#allocation4], 1
    %491 = vsyncpa %s490, 1
    %492 = vsyncpa [#allocation7], 1
    %s493 = scalar_lea.sflag [#allocation7], 1
    %494 = vsyncpa %s493, 1

</llo_original>
